<compile_context>
chip_gen: v6e
topology: v6e:2x2x1
jax: 0.10.0
libtpu: 0.0.40
codegen_flags: <defaults>
</compile_context>

<pallas_src>
import jax
import jax.numpy as jnp
from jax.experimental import pallas as pl
from jax.experimental.pallas import tpu as pltpu


def _round_up(x, m):
    return ((x + m - 1) // m) * m


def _cdiv(a, b):
    return -(-a // b)


def _sublane_align(dtype):
    # 8 sublanes for 4-byte dtypes, 16 for bf16, 32 for 1-byte dtypes.
    return max(8, 32 // jnp.dtype(dtype).itemsize)


def _default_vmem_limit_bytes():
    cap = None
    try:
        cap = getattr(pltpu.get_tpu_info(), "vmem_capacity_bytes", None)
    except Exception:
        cap = None
    if not cap:
        cap = 64 * 1024 * 1024  # conservative fallback (v7x-sized)
    # ~85% of physical VMEM, capped at ~110 MiB on 128 MiB parts (v5e/v6e);
    # on 64 MiB v7x this lands at ~54 MiB, leaving compiler scratch headroom.
    return min(int(cap * 0.85), 110 * 1024 * 1024)


def _tile_vmem_bytes(tm, th, d_model, isz_x, isz_w):
    """Approximate VMEM working set for one grid step (double-buffered tiles)."""
    x_b = 2 * tm * d_model * isz_x            # input tile
    o_b = 2 * tm * d_model * isz_x            # output tile
    w13_b = 2 * d_model * (2 * th) * isz_w    # [W1^T | W3^T] tile
    w2_b = 2 * th * d_model * isz_w           # W2^T tile
    acc_b = tm * d_model * 4                  # f32 accumulator scratch
    tmp_b = (2 * tm * th + tm * th + tm * d_model) * 4   # h / gated / partial
    return x_b + o_b + w13_b + w2_b + acc_b + tmp_b


def _make_swiglu_kernel(n_ht):
    """Kernel specialized on the (static) number of hidden tiles."""

    def _project(x_ref, w13_ref, w2t_ref):
        th = w2t_ref.shape[0]
        x = x_ref[...]
        # Fused gate/up projection: one wide MXU matmul, lane-aligned split.
        h = jnp.dot(x, w13_ref[...], preferred_element_type=jnp.float32)
        h1 = h[:, :th]
        h3 = h[:, th:]
        gated = (h1 * jax.nn.sigmoid(h1)) * h3            # SiLU(h1) * h3
        # Down-projection partial sum for this hidden tile (f32 accumulate).
        return jnp.dot(gated.astype(w2t_ref.dtype), w2t_ref[...],
                       preferred_element_type=jnp.float32)

    if n_ht == 1:
        def kernel(x_ref, w13_ref, w2t_ref, o_ref):
            o_ref[...] = _project(x_ref, w13_ref, w2t_ref).astype(o_ref.dtype)
    else:
        def kernel(x_ref, w13_ref, w2t_ref, o_ref, acc_ref):
            j = pl.program_id(1)
            partial = _project(x_ref, w13_ref, w2t_ref)

            @pl.when(j == 0)
            def _():
                acc_ref[...] = partial

            @pl.when(jnp.logical_and(j > 0, j < n_ht - 1))
            def _():
                acc_ref[...] += partial

            # Fused final write: no extra accumulator store + reload.
            @pl.when(j == n_ht - 1)
            def _():
                o_ref[...] = (acc_ref[...] + partial).astype(o_ref.dtype)

    return kernel


def prepare_swiglu_weights(w1, w2, w3, th, dtype=None):
    """One-time weight layout transform (call ONCE at model init in real use).

    w1, w3: [d_hidden, d_model]; w2: [d_model, d_hidden]; th: hidden tile
    (multiple of 128).  Optionally casts weights once (e.g. to bf16).
    Returns:
      w13_tiles: [n_ht, d_model, 2*th]  -- [W1^T | W3^T] per hidden tile
      w2_tiles : [n_ht, th, d_model]    -- W2^T per hidden tile
    """
    assert th % 128 == 0, "hidden tile must be a multiple of 128"
    if dtype is not None:
        w1, w2, w3 = (w.astype(dtype) for w in (w1, w2, w3))
    d_hidden, d_model = w1.shape
    n_ht = _cdiv(d_hidden, th)
    dh_pad = n_ht * th
    if dh_pad != d_hidden:
        pad_h = dh_pad - d_hidden
        w1 = jnp.pad(w1, ((0, pad_h), (0, 0)))
        w3 = jnp.pad(w3, ((0, pad_h), (0, 0)))
        w2 = jnp.pad(w2, ((0, 0), (0, pad_h)))
    w1_t = w1.reshape(n_ht, th, d_model).transpose(0, 2, 1)   # [n_ht, d_model, th]
    w3_t = w3.reshape(n_ht, th, d_model).transpose(0, 2, 1)
    w13_tiles = jnp.concatenate([w1_t, w3_t], axis=-1)        # [n_ht, d_model, 2*th]
    w2_tiles = w2.T.reshape(n_ht, th, d_model)                # [n_ht, th, d_model]
    return w13_tiles, w2_tiles


def swiglu_ffn(x, w1, w2, w3, *, tm=1024, th=512, compute_dtype=None,
               vmem_limit_bytes=None):
    """out = W2( SiLU(W1 x) * W3 x ).

    x: [batch, seq, d_model]; w1, w3: [d_hidden, d_model]; w2: [d_model, d_hidden].
    For real model sizes pass compute_dtype=jnp.bfloat16 (halves weight DMA
    bytes; accumulation stays f32 on the MXU).
    """
    batch, seq, d_model = x.shape
    d_hidden = w1.shape[0]
    n = batch * seq

    if compute_dtype is not None:
        x = x.astype(compute_dtype)
    x_dtype = x.dtype
    w_dtype = compute_dtype if compute_dtype is not None else w1.dtype
    isz_x = jnp.dtype(x_dtype).itemsize
    isz_w = jnp.dtype(w_dtype).itemsize
    align = _sublane_align(x_dtype)

    if vmem_limit_bytes is None:
        vmem_limit_bytes = _default_vmem_limit_bytes()

    # Hidden tile: always a multiple of 128 lanes so the gate/up split of the
    # fused matmul output is lane-aligned, even when n_ht == 1.
    th = min(_round_up(th, 128), _round_up(d_hidden, 128))

    # Token tile: sublane-pack aligned for the compute dtype, clamped to the
    # (padded) token count.  Big tm = high arithmetic intensity (weights are
    # re-streamed from HBM once per token tile).
    tm = max(align, min(_round_up(tm, align), _round_up(n, align)))

    # Shrink tiles (th first, then tm) until the double-buffered working set
    # fits the VMEM budget.
    budget = int(vmem_limit_bytes * 0.8)
    while _tile_vmem_bytes(tm, th, d_model, isz_x, isz_w) > budget:
        if th > 128:
            th = max(128, _round_up(th // 2, 128))
        elif tm > align:
            tm = max(align, _round_up(tm // 2, align))
        else:
            break

    # Megacore (v7x): make sure the "parallel" token axis has >= 2 grid steps
    # so both TensorCores get work.
    if _cdiv(n, tm) < 2 and n > align:
        tm = max(align, _round_up(_cdiv(n, 2), align))

    n_pad = _round_up(n, tm)
    n_ht = _cdiv(d_hidden, th)
    dh_pad = n_ht * th

    x2d = x.reshape(n, d_model)
    if n_pad != n:
        x2d = jnp.pad(x2d, ((0, n_pad - n), (0, 0)))

    # NOTE: in a real model call prepare_swiglu_weights() once at init (with
    # dtype=jnp.bfloat16) and pass the prepared tiles in, to avoid per-call
    # weight transposes/casts.
    w13_tiles, w2_tiles = prepare_swiglu_weights(w1, w2, w3, th,
                                                 dtype=compute_dtype)

    num_token_tiles = n_pad // tm
    cost = pl.CostEstimate(
        flops=6 * n_pad * d_model * dh_pad,
        transcendentals=n_pad * dh_pad,
        # Weights are re-streamed once per token tile; activations in + out.
        bytes_accessed=isz_x * 2 * n_pad * d_model
        + isz_w * 3 * d_model * dh_pad * num_token_tiles,
    )

    kernel = _make_swiglu_kernel(n_ht)
    scratch_shapes = [] if n_ht == 1 else [pltpu.VMEM((tm, d_model), jnp.float32)]

    out2d = pl.pallas_call(
        kernel,
        out_shape=jax.ShapeDtypeStruct((n_pad, d_model), x_dtype),
        grid_spec=pltpu.PrefetchScalarGridSpec(
            num_scalar_prefetch=0,
            grid=(num_token_tiles, n_ht),   # hidden (reduction) axis innermost
            in_specs=[
                pl.BlockSpec((tm, d_model), lambda i, j: (i, 0)),
                pl.BlockSpec((pl.Squeezed(), d_model, 2 * th),
                             lambda i, j: (j, 0, 0)),
                pl.BlockSpec((pl.Squeezed(), th, d_model),
                             lambda i, j: (j, 0, 0)),
            ],
            out_specs=pl.BlockSpec((tm, d_model), lambda i, j: (i, 0)),
            scratch_shapes=scratch_shapes,
        ),
        compiler_params=pltpu.CompilerParams(
            dimension_semantics=("parallel", "arbitrary"),
            vmem_limit_bytes=int(vmem_limit_bytes),
        ),
        cost_estimate=cost,
    )(x2d, w13_tiles, w2_tiles)

    return out2d[:n].reshape(batch, seq, d_model)


def swiglu_ffn_reference(x, w1, w2, w3):
    h1 = jnp.einsum("bsd,hd->bsh", x, w1)
    h3 = jnp.einsum("bsd,hd->bsh", x, w3)
    g = (h1 * jax.nn.sigmoid(h1)) * h3
    return jnp.einsum("bsh,dh->bsd", g, w2)


if __name__ == "__main__":
    key = jax.random.PRNGKey(0)
    kx, k1, k2, k3 = jax.random.split(key, 4)

    # Test 1: small module-consistent shapes (single hidden tile, f32).
    batch, seq, d_model, d_hidden = 2, 8, 32, 64
    x = jax.random.normal(kx, (batch, seq, d_model), dtype=jnp.float32)
    # "Linear" weights: [out_features, in_features], bias-free.
    w1 = jax.random.normal(k1, (d_hidden, d_model), dtype=jnp.float32) * 0.05
    w2 = jax.random.normal(k2, (d_model, d_hidden), dtype=jnp.float32) * 0.05
    w3 = jax.random.normal(k3, (d_hidden, d_model), dtype=jnp.float32) * 0.05

    out = jax.block_until_ready(swiglu_ffn(x, w1, w2, w3))
    ref = swiglu_ffn_reference(x, w1, w2, w3)
    assert out.shape == (batch, seq, d_model)
    assert jnp.allclose(out, ref, atol=1e-4, rtol=1e-4)

    # Test 2: hidden-axis accumulation (n_ht=2), multiple token tiles, ragged N.
    kx2, k12, k22, k32 = jax.random.split(jax.random.PRNGKey(1), 4)
    b2, s2, dm2, dh2 = 2, 12, 128, 256
    x2 = jax.random.normal(kx2, (b2, s2, dm2), dtype=jnp.float32)
    w1b = jax.random.normal(k12, (dh2, dm2), dtype=jnp.float32) * 0.05
    w2b = jax.random.normal(k22, (dm2, dh2), dtype=jnp.float32) * 0.05
    w3b = jax.random.normal(k32, (dh2, dm2), dtype=jnp.float32) * 0.05

    out2 = jax.block_until_ready(swiglu_ffn(x2, w1b, w2b, w3b, tm=16, th=128))
    ref2 = swiglu_ffn_reference(x2, w1b, w2b, w3b)
    assert jnp.allclose(out2, ref2, atol=1e-4, rtol=1e-4)

    # Test 3: the recommended real-model configuration — bf16 activations and
    # weights (cast once), f32 MXU accumulation, 16-aligned token tiles.
    kx3, k13, k23, k33 = jax.random.split(jax.random.PRNGKey(2), 4)
    b3, s3, dm3, dh3 = 2, 64, 256, 512
    x3 = jax.random.normal(kx3, (b3, s3, dm3), dtype=jnp.float32)
    w1c = jax.random.normal(k13, (dh3, dm3), dtype=jnp.float32) * 0.05
    w2c = jax.random.normal(k23, (dm3, dh3), dtype=jnp.float32) * 0.05
    w3c = jax.random.normal(k33, (dh3, dm3), dtype=jnp.float32) * 0.05

    out3 = jax.block_until_ready(
        swiglu_ffn(x3, w1c, w2c, w3c, compute_dtype=jnp.bfloat16))
    ref3 = swiglu_ffn_reference(
        x3.astype(jnp.bfloat16).astype(jnp.float32),
        w1c.astype(jnp.bfloat16).astype(jnp.float32),
        w2c.astype(jnp.bfloat16).astype(jnp.float32),
        w3c.astype(jnp.bfloat16).astype(jnp.float32))
    assert jnp.allclose(out3.astype(jnp.float32), ref3, atol=5e-2, rtol=5e-2)

    print("KERNEL_OK")
</pallas_src>

<mosaic_0001>
module attributes {stable_mosaic.version = 11 : i64} {
  func.func @kernel(%arg0: i32, %arg1: i32, %arg2: memref<8x32xf32, #tpu.memory_space<vmem>>, %arg3: memref<1x32x256xf32, #tpu.memory_space<vmem>>, %arg4: memref<1x128x32xf32, #tpu.memory_space<vmem>>, %arg5: memref<8x32xf32, #tpu.memory_space<vmem>>) attributes {dimension_semantics = [#tpu.dimension_semantics<parallel>, #tpu.dimension_semantics<arbitrary>], iteration_bounds = array<i64: 2, 1>, scalar_prefetch = 0 : i64, scratch_operands = 0 : i64, tpu.core_type = #tpu.core_type<tc>, window_params = [{transform_indices = @transform_0, window_bounds = array<i64: 8, 32>}, {transform_indices = @transform_1, window_bounds = array<i64: 1, 32, 256>}, {transform_indices = @transform_2, window_bounds = array<i64: 1, 128, 32>}, {transform_indices = @transform_3, window_bounds = array<i64: 8, 32>}]} {
    %c0 = arith.constant 0 : index
    %c0_0 = arith.constant 0 : index
    %0 = vector.load %arg2[%c0, %c0_0] : memref<8x32xf32, #tpu.memory_space<vmem>>, vector<8x32xf32>
    %c0_1 = arith.constant 0 : index
    %c0_2 = arith.constant 0 : index
    %c0_3 = arith.constant 0 : index
    %1 = vector.load %arg3[%c0_1, %c0_2, %c0_3] : memref<1x32x256xf32, #tpu.memory_space<vmem>>, vector<1x32x256xf32>
    %2 = vector.shape_cast %1 : vector<1x32x256xf32> to vector<32x256xf32>
    %cst = arith.constant dense<0.000000e+00> : vector<8x256xf32>
    %3 = tpu.matmul %0, %2, %cst {dimension_numbers = #tpu.dot_dimension_numbers<[1], [0], [0], [1], [0, 0, 1, 1], [], []>} : vector<8x32xf32>, vector<32x256xf32>, vector<8x256xf32> -> vector<8x256xf32>
    %4 = vector.extract_strided_slice %3 {offsets = [0, 0], sizes = [8, 128], strides = [1, 1]} : vector<8x256xf32> to vector<8x128xf32>
    %5 = vector.extract_strided_slice %3 {offsets = [0, 128], sizes = [8, 128], strides = [1, 1]} : vector<8x256xf32> to vector<8x128xf32>
    %6 = arith.negf %4 : vector<8x128xf32>
    %7 = math.exp %6 : vector<8x128xf32>
    %cst_4 = arith.constant 1.000000e+00 : f32
    %8 = vector.broadcast %cst_4 : f32 to vector<8x128xf32>
    %9 = arith.addf %8, %7 : vector<8x128xf32>
    %10 = arith.divf %8, %9 : vector<8x128xf32>
    %11 = arith.mulf %4, %10 : vector<8x128xf32>
    %12 = arith.mulf %11, %5 : vector<8x128xf32>
    %c0_5 = arith.constant 0 : index
    %c0_6 = arith.constant 0 : index
    %c0_7 = arith.constant 0 : index
    %13 = vector.load %arg4[%c0_5, %c0_6, %c0_7] : memref<1x128x32xf32, #tpu.memory_space<vmem>>, vector<1x128x32xf32>
    %14 = vector.shape_cast %13 : vector<1x128x32xf32> to vector<128x32xf32>
    %cst_8 = arith.constant dense<0.000000e+00> : vector<8x32xf32>
    %15 = tpu.matmul %12, %14, %cst_8 {dimension_numbers = #tpu.dot_dimension_numbers<[1], [0], [0], [1], [0, 0, 1, 1], [], []>} : vector<8x128xf32>, vector<128x32xf32>, vector<8x32xf32> -> vector<8x32xf32>
    %c0_9 = arith.constant 0 : index
    %c0_10 = arith.constant 0 : index
    %16 = vector.load %arg5[%c0_9, %c0_10] : memref<8x32xf32, #tpu.memory_space<vmem>>, vector<8x32xf32>
    tpu.vector_store %arg5[%c0_9, %c0_10], %15 {strides = array<i32>} : memref<8x32xf32, #tpu.memory_space<vmem>>, vector<8x32xf32>,
    return
  }
  func.func @transform_0(%arg0: i32, %arg1: i32) -> (i32, i32) {
    %c0_i32 = arith.constant 0 : i32
    %c0_i32_0 = arith.constant 0 : i32
    return %arg0, %c0_i32 : i32, i32
  }
  func.func @transform_1(%arg0: i32, %arg1: i32) -> (i32, i32, i32) {
    %c0_i32 = arith.constant 0 : i32
    %c0_i32_0 = arith.constant 0 : i32
    %c0_i32_1 = arith.constant 0 : i32
    return %arg1, %c0_i32, %c0_i32_0 : i32, i32, i32
  }
  func.func @transform_2(%arg0: i32, %arg1: i32) -> (i32, i32, i32) {
    %c0_i32 = arith.constant 0 : i32
    %c0_i32_0 = arith.constant 0 : i32
    %c0_i32_1 = arith.constant 0 : i32
    return %arg1, %c0_i32, %c0_i32_0 : i32, i32, i32
  }
  func.func @transform_3(%arg0: i32, %arg1: i32) -> (i32, i32) {
    %c0_i32 = arith.constant 0 : i32
    %c0_i32_0 = arith.constant 0 : i32
    return %arg0, %c0_i32 : i32, i32
  }
}

</mosaic_0001>

<llo_original>
// kernel: tpu_custom_call.1
$region0: #{tpu_custom_call.1}
  #allocation0 [shape = 'u32[]', space=smem, size = 0x4, offset = 0x4, fixed_abs, tag = 'smem constant byte address 0x4 - core index']
  #allocation1 [shape = 'u32[144,128]{1,0:T(1,128)}', space=vmem, size = 0x12000, scoped, tag = 'internal scratch']
  %s0 = inlined_call_operand.vmem [shape: f32[16,32], index: 0, kind: input, shape index: {}]
  %s1 = inlined_call_operand.vmem [shape: f32[1,32,256], index: 1, kind: input, shape index: {}]
  %s2 = inlined_call_operand.vmem [shape: f32[1,128,32], index: 2, kind: input, shape index: {}]
  %s3 = inlined_call_operand.hbm [shape: f32[16,32], index: 3, kind: output, shape index: {}]
  %s4 = sld [smem:[#allocation0]]
  $region45: #{tpu_custom_call.1} parent=0
    _
  %s6 = ssub.s32 1, %s4
  %s7 = scalar_select 0, %s6, %s4
  $region1: #{tpu_custom_call.1} parent=0
    #allocation2 [shape = 'u8[8192]{0}', space=vmem, size = 0x2000, scoped, tag = 'output window, operand 0']
    #allocation3 [shape = 's32[2]{0}', space=sflag, size = 0x8, scoped, tag = 'scoped memory for tpu_custom_call.1']
    %8 = vsyncpa [#allocation3], 0
    %s9 = scalar_lea.sflag [#allocation3], 1
    %10 = vsyncpa %s9, 0
    loop: start=0, step=1, limit=4
    $region2: #{tpu_custom_call.1} parent=1 // loop_pre_header
      _
    $region3: #{tpu_custom_call.1} parent=1 // loop_header
      %s12 = sphi 0, %s16
      %p13 = scmp.ge.s32.totalorder %s12, 4
      %s19 = sphi 0, %s31
      %s20 = sphi 0, %s27
      %s21 = sphi 0, %s19
      %s22 = sphi 0, %s20
      %s23 = sphi 0, %s21
      %s24 = sphi 0, %s22
      %s34 = sphi 0, %s36
      %s37 = sphi 0, %s34
      %s38 = sphi 0, %s37
      %s54 = sphi 0, %s38
      %s60 = sphi 0, %s62
      %s63 = sphi 0, %s60
      %s64 = sphi 0, %s63
      %s80 = sphi 0, %s64
      %s86 = sphi 0, %s88
      %s89 = sphi 0, %s86
      %s90 = sphi 0, %s89
      %s106 = sphi 0, %s90
      %s112 = sphi 0, %s114
      %s115 = sphi 0, %s112
      %s116 = sphi 0, %s115
      %s132 = sphi 0, %s116
    $region4: #{tpu_custom_call.1} parent=1 // loop_header_branch
      %15 = sbr.rel (%p13) target = $region8
    $region5: #{tpu_custom_call.1} parent=1 // loop_body
      %s17 = ssub.s32 %s12, 1
      %s18 = ssub.s32 %s12, 2
      %s25 = sadd.s32 1, %s20
      %p26 = scmp.ge.s32.totalorder %s25, 1
      %s27 = scalar_select %p26, 0, %s25
      %s28 = sadd.s32 1, %s19
      %s29 = scalar_select %p26, %s28, %s19
      %p30 = scmp.ge.s32.totalorder %s29, 2
      %s31 = scalar_select %p30, 0, %s29
      %s32 = ssub.s32 %s19, %s31
      %p33 = scmp.eq.s32.totalorder %s32, 0
      %s35 = sadd.s32 %s34, 1
      %s36 = scalar_select %p33, %s34, %s35
      %p39 = pneg %p33
      %p40 = scmp.eq.s32.totalorder %s12, 1
      %p41 = por %p39, %p40
      %p42 = scmp.ne.s32.totalorder %s34, %s37
      %p43 = scmp.eq.s32.totalorder %s12, 0
      %p44 = por %p42, %p43
      %p45 = scmp.ne.s32.totalorder %s34, %s37
      %p46 = scmp.eq.s32.totalorder %s17, 1
      %p47 = por %p45, %p46
      %p48 = scmp.ne.s32.totalorder %s37, %s38
      %p49 = scmp.eq.s32.totalorder %s17, 0
      %p50 = por %p48, %p49
      %p51 = scmp.ne.s32.totalorder %s37, %s38
      %p52 = scmp.eq.s32.totalorder %s18, 1
      %p53 = por %p51, %p52
      %p55 = scmp.ne.s32.totalorder %s38, %s54
      %p56 = scmp.eq.s32.totalorder %s18, 0
      %p57 = por %p55, %p56
      %s58 = ssub.s32 %s20, %s27
      %p59 = scmp.eq.s32.totalorder %s58, 0
      %s61 = sadd.s32 %s60, 1
      %s62 = scalar_select %p59, %s60, %s61
      %p65 = pneg %p59
      %p66 = scmp.eq.s32.totalorder %s12, 1
      %p67 = por %p65, %p66
      %p68 = scmp.ne.s32.totalorder %s60, %s63
      %p69 = scmp.eq.s32.totalorder %s12, 0
      %p70 = por %p68, %p69
      %p71 = scmp.ne.s32.totalorder %s60, %s63
      %p72 = scmp.eq.s32.totalorder %s17, 1
      %p73 = por %p71, %p72
      %p74 = scmp.ne.s32.totalorder %s63, %s64
      %p75 = scmp.eq.s32.totalorder %s17, 0
      %p76 = por %p74, %p75
      %p77 = scmp.ne.s32.totalorder %s63, %s64
      %p78 = scmp.eq.s32.totalorder %s18, 1
      %p79 = por %p77, %p78
      %p81 = scmp.ne.s32.totalorder %s64, %s80
      %p82 = scmp.eq.s32.totalorder %s18, 0
      %p83 = por %p81, %p82
      %s84 = ssub.s32 %s20, %s27
      %p85 = scmp.eq.s32.totalorder %s84, 0
      %s87 = sadd.s32 %s86, 1
      %s88 = scalar_select %p85, %s86, %s87
      %p91 = pneg %p85
      %p92 = scmp.eq.s32.totalorder %s12, 1
      %p93 = por %p91, %p92
      %p94 = scmp.ne.s32.totalorder %s86, %s89
      %p95 = scmp.eq.s32.totalorder %s12, 0
      %p96 = por %p94, %p95
      %p97 = scmp.ne.s32.totalorder %s86, %s89
      %p98 = scmp.eq.s32.totalorder %s17, 1
      %p99 = por %p97, %p98
      %p100 = scmp.ne.s32.totalorder %s89, %s90
      %p101 = scmp.eq.s32.totalorder %s17, 0
      %p102 = por %p100, %p101
      %p103 = scmp.ne.s32.totalorder %s89, %s90
      %p104 = scmp.eq.s32.totalorder %s18, 1
      %p105 = por %p103, %p104
      %p107 = scmp.ne.s32.totalorder %s90, %s106
      %p108 = scmp.eq.s32.totalorder %s18, 0
      %p109 = por %p107, %p108
      %s110 = ssub.s32 %s19, %s31
      %p111 = scmp.eq.s32.totalorder %s110, 0
      %s113 = sadd.s32 %s112, 1
      %s114 = scalar_select %p111, %s112, %s113
      %p117 = pneg %p111
      %p118 = scmp.eq.s32.totalorder %s12, 1
      %p119 = por %p117, %p118
      %p120 = scmp.ne.s32.totalorder %s112, %s115
      %p121 = scmp.eq.s32.totalorder %s12, 0
      %p122 = por %p120, %p121
      %p123 = scmp.ne.s32.totalorder %s112, %s115
      %p124 = scmp.eq.s32.totalorder %s17, 1
      %p125 = por %p123, %p124
      %p126 = scmp.ne.s32.totalorder %s115, %s116
      %p127 = scmp.eq.s32.totalorder %s17, 0
      %p128 = por %p126, %p127
      %p129 = scmp.ne.s32.totalorder %s115, %s116
      %p130 = scmp.eq.s32.totalorder %s18, 1
      %p131 = por %p129, %p130
      %p133 = scmp.ne.s32.totalorder %s116, %s132
      %p134 = scmp.eq.s32.totalorder %s18, 0
      %p135 = por %p133, %p134
      %p136 = scmp.le.s32.totalorder 1, %s12
      %p137 = scmp.lt.s32.totalorder %s12, 3
      %p138 = pnand %p136, %p137
      %p139 = pneg %p138
      // Predicated region
      $region9: #{tpu_custom_call.1} parent=5 // pred_check
        _
      $region10: #{tpu_custom_call.1} parent=5 // pred_check_branch
        %141 = sbr.rel (%p138) target = $region12
      $region11: #{tpu_custom_call.1} parent=5 // pred_region
        %s142 = ssub.s32 %s12, 1
        // Predicated region
        $region13: #{tpu_custom_call.1} parent=11 // pred_check
          %p143 = pneg %p76
        $region14: #{tpu_custom_call.1} parent=11 // pred_check_branch
          %145 = sbr.rel (%p143) target = $region16
        $region15: #{tpu_custom_call.1} parent=11 // pred_region
          %p146 = scmp.lt.s32.totalorder %s22, 0
          %s147 = scalar_select %p146, %s22, 0
          %s148 = smul.addr %s147, 8
          %s149 = smul.addr %s148, 8
          %s150 = scalar_lea.vmem %s1, %s149
        $region16: #{tpu_custom_call.1} parent=11 // pred_fallthru
          _
        // Predicated region
        $region17: #{tpu_custom_call.1} parent=11 // pred_check
          %p151 = pneg %p102
        $region18: #{tpu_custom_call.1} parent=11 // pred_check_branch
          %153 = sbr.rel (%p151) target = $region20
        $region19: #{tpu_custom_call.1} parent=11 // pred_region
          %p154 = scmp.lt.s32.totalorder %s22, 0
          %s155 = scalar_select %p154, %s22, 0
          %s156 = smul.addr %s155, 16
          %s157 = smul.addr %s156, 8
          %s158 = scalar_lea.vmem %s2, %s157
        $region20: #{tpu_custom_call.1} parent=11 // pred_fallthru
          _
      $region12: #{tpu_custom_call.1} parent=5 // pred_fallthru
        _
      %p159 = scmp.lt.s32.totalorder %s12, 2
      // Predicated region
      $region21: #{tpu_custom_call.1} parent=5 // pred_check
        %p160 = pneg %p159
      $region22: #{tpu_custom_call.1} parent=5 // pred_check_branch
        %162 = sbr.rel (%p160) target = $region24
      $region23: #{tpu_custom_call.1} parent=5 // pred_region
        // Predicated region
        $region25: #{tpu_custom_call.1} parent=23 // pred_check
          %p163 = pneg %p44
        $region26: #{tpu_custom_call.1} parent=23 // pred_check_branch
          %165 = sbr.rel (%p163) target = $region28
        $region27: #{tpu_custom_call.1} parent=23 // pred_region
          %p166 = scmp.lt.s32.totalorder %s19, 1
          %s167 = scalar_select %p166, %s19, 1
          %s168 = smul.addr %s167, 8
          %s169 = scalar_lea.vmem %s0, %s168
        $region28: #{tpu_custom_call.1} parent=23 // pred_fallthru
          _
      $region24: #{tpu_custom_call.1} parent=5 // pred_fallthru
        _
      %p170 = scmp.le.s32.totalorder 1, %s12
      %p171 = scmp.lt.s32.totalorder %s12, 3
      %p172 = pnand %p170, %p171
      %p173 = pneg %p172
      // Predicated region
      $region29: #{tpu_custom_call.1} parent=5 // pred_check
        _
      $region30: #{tpu_custom_call.1} parent=5 // pred_check_branch
        %175 = sbr.rel (%p172) target = $region32
      $region31: #{tpu_custom_call.1} parent=5 // pred_region
        %s176 = ssub.s32 %s12, 1
        %p177 = scmp.lt.s32.totalorder %s21, 1
        %s178 = scalar_select %p177, %s21, 1
        %s179 = smul.addr %s178, 8
        %s180 = scalar_lea.vmem %s0, %s179
        %p181 = pneg %p50
        %p182 = pneg %p47
        %p183 = scmp.lt.s32.totalorder %s22, 0
        %s184 = scalar_select %p183, %s22, 0
        %s185 = smul.addr %s184, 8
        %s186 = smul.addr %s185, 8
        %s187 = scalar_lea.vmem %s1, %s186
        %p188 = pneg %p76
        %p189 = pneg %p73
        %p190 = scmp.lt.s32.totalorder %s22, 0
        %s191 = scalar_select %p190, %s22, 0
        %s192 = smul.addr %s191, 16
        %s193 = smul.addr %s192, 8
        %s194 = scalar_lea.vmem %s2, %s193
        %p195 = pneg %p102
        %p196 = pneg %p99
        %p197 = pneg %p128
        %p198 = pneg %p125
        %s199 = sand.u32 %s115, 1
        %s200 = scalar_lea.sflag [#allocation3], %s199
        %s201 = sand.u32 %s115, 1
        %s202 = smul.addr %s201, 8
        %s203 = scalar_lea.vmem [#allocation2], %s202
        %p204 = scmp.lt.s32.totalorder %s21, 1
        %s205 = scalar_select %p204, %s21, 1
        %s206 = smul.addr %s205, 8
        %s207 = scalar_lea.vmem %s0, %s206
        %p208 = scmp.lt.s32.totalorder %s22, 0
        %s209 = scalar_select %p208, %s22, 0
        %s210 = smul.addr %s209, 8
        %s211 = smul.addr %s210, 8
        %s212 = scalar_lea.vmem %s1, %s211
        %p213 = scmp.lt.s32.totalorder %s22, 0
        %s214 = scalar_select %p213, %s22, 0
        %s215 = smul.addr %s214, 16
        %s216 = smul.addr %s215, 8
        %s217 = scalar_lea.vmem %s2, %s216
        %v218 = vld [vmem:[%s207] sm:$0xff]
        %v219 = vld [vmem:[%s212] sm:$0xff]
        %v220 = vld [vmem:[%s212 + $0x8] sm:$0xff]
        %v221 = vld [vmem:[%s212 + $0x10] sm:$0xff]
        %v222 = vld [vmem:[%s212 + $0x18] sm:$0xff]
        %v223 = vld [vmem:[%s212 + $0x20] sm:$0xff]
        %v224 = vld [vmem:[%s212 + $0x28] sm:$0xff]
        %v225 = vld [vmem:[%s212 + $0x30] sm:$0xff]
        %v226 = vld [vmem:[%s212 + $0x38] sm:$0xff]
        %vm227 = vcmask 261120
        %v229 = vsel %vm227, %v218, 0
        %231 = vmatprep.subr.mxu0 0.0
        %232 = vmatpush1.msra.mxu0 0.0
        %233 = vmatprep.subr.mxu0 0.0
        %234 = vmatpush1.msra.mxu0 0.0
        %235 = vmatprep.subr.mxu0 0.0
        %236 = vmatpush1.msra.mxu0 0.0
        %237 = vmatprep.subr.mxu0 0.0
        %238 = vmatpush1.msra.mxu0 0.0
        %239 = vmatprep.subr.mxu0 0.0
        %240 = vmatpush1.msra.mxu0 0.0
        %241 = vmatprep.subr.mxu0 0.0
        %242 = vmatpush1.msra.mxu0 0.0
        %243 = vmatprep.subr.mxu0 0.0
        %244 = vmatpush1.msra.mxu0 0.0
        %245 = vmatprep.subr.mxu0 0.0
        %246 = vmatpush1.msra.mxu0 0.0
        %247 = vmatprep.subr.mxu0 0.0
        %248 = vmatpush1.msra.mxu0 0.0
        %249 = vmatprep.subr.mxu0 0.0
        %250 = vmatpush1.msra.mxu0 0.0
        %251 = vmatprep.subr.mxu0 0.0
        %252 = vmatpush1.msra.mxu0 0.0
        %253 = vmatprep.subr.mxu0 0.0
        %254 = vmatpush1.msra.mxu0 0.0
        %255 = vmatprep.subr.mxu0 %v226
        %256 = vmatpush1.msra.mxu0 %v225
        %257 = vmatprep.subr.mxu0 %v224
        %258 = vmatpush1.msra.mxu0 %v223
        %259 = vmatprep.subr.mxu0 %v222
        %260 = vmatpush1.msra.mxu0 %v221
        %261 = vmatprep.subr.mxu0 %v220
        %262 = vmatpush1.msra.mxu0 %v219
        %263 = vmatprep.subr.mxu0 0.0
        %264 = vmatpush2.msra.mxu0 0.0
        %265 = vmatprep.subr.mxu0 0.0
        %266 = vmatpush2.msra.mxu0 0.0
        %267 = vmatprep.subr.mxu0 0.0
        %268 = vmatpush2.msra.mxu0 0.0
        %269 = vmatprep.subr.mxu0 0.0
        %270 = vmatpush2.msra.mxu0 0.0
        %271 = vmatprep.subr.mxu0 0.0
        %272 = vmatpush2.msra.mxu0 0.0
        %273 = vmatprep.subr.mxu0 0.0
        %274 = vmatpush2.msra.mxu0 0.0
        %275 = vmatprep.subr.mxu0 0.0
        %276 = vmatpush2.msra.mxu0 0.0
        %277 = vmatprep.subr.mxu0 0.0
        %278 = vmatpush2.msra.mxu0 0.0
        %279 = vmatprep.subr.mxu0 0.0
        %280 = vmatpush2.msra.mxu0 0.0
        %281 = vmatprep.subr.mxu0 0.0
        %282 = vmatpush2.msra.mxu0 0.0
        %283 = vmatprep.subr.mxu0 0.0
        %284 = vmatpush2.msra.mxu0 0.0
        %285 = vmatprep.subr.mxu0 0.0
        %286 = vmatpush2.msra.mxu0 0.0
        %287 = vmatprep.subr.mxu0 0.0
        %288 = vmatpush2.msra.mxu0 0.0
        %289 = vmatprep.subr.mxu0 0.0
        %290 = vmatpush2.msra.mxu0 0.0
        %291 = vmatprep.subr.mxu0 0.0
        %292 = vmatpush2.msra.mxu0 0.0
        %293 = vmatprep.subr.mxu0 0.0
        %294 = vmatpush2.msra.mxu0 0.0
        %295 = vmatprep.mubr.f32.mxu0 0.0
        %296 = vmatmul.mubr.f32.gmra.mxu0 %v229
        %v297 = vpop.f32.mrf.mxu0
        %v298 = vadd.f32 0.0, %v297
        %v299 = vpop.f32.mrf.mxu0
        %v300 = vadd.f32 0.0, %v299
        %301 = vdwg.mxu0
        %v302 = vxor.u32 %v298, 2147483648
        %v303 = vmul.f32 %v302, 1.442695
        %v304 = vpow.pop %v303
        %v305 = vadd.f32 %v304, 1.0
        %v306 = vrcp.pop %v305
        %v307 = vmul.f32 1.0, %v306
        %v308 = vmul.f32 %v298, %v307
        %v309 = vmul.f32 %v308, %v300
        %v310 = vld [vmem:[%s217] sm:$0xff]
        %v311 = vld [vmem:[%s217 + $0x8] sm:$0xff]
        %v312 = vld [vmem:[%s217 + $0x10] sm:$0xff]
        %v313 = vld [vmem:[%s217 + $0x18] sm:$0xff]
        %v314 = vld [vmem:[%s217 + $0x20] sm:$0xff]
        %v315 = vld [vmem:[%s217 + $0x28] sm:$0xff]
        %v316 = vld [vmem:[%s217 + $0x30] sm:$0xff]
        %v317 = vld [vmem:[%s217 + $0x38] sm:$0xff]
        %v318 = vld [vmem:[%s217 + $0x40] sm:$0xff]
        %v319 = vld [vmem:[%s217 + $0x48] sm:$0xff]
        %v320 = vld [vmem:[%s217 + $0x50] sm:$0xff]
        %v321 = vld [vmem:[%s217 + $0x58] sm:$0xff]
        %v322 = vld [vmem:[%s217 + $0x60] sm:$0xff]
        %v323 = vld [vmem:[%s217 + $0x68] sm:$0xff]
        %v324 = vld [vmem:[%s217 + $0x70] sm:$0xff]
        %v325 = vld [vmem:[%s217 + $0x78] sm:$0xff]
        %326 = vmatprep.subr.mxu0 0.0
        %327 = vmatpush1.msra.mxu0 %v325
        %328 = vmatprep.subr.mxu0 0.0
        %329 = vmatpush1.msra.mxu0 %v324
        %330 = vmatprep.subr.mxu0 0.0
        %331 = vmatpush1.msra.mxu0 %v323
        %332 = vmatprep.subr.mxu0 0.0
        %333 = vmatpush1.msra.mxu0 %v322
        %334 = vmatprep.subr.mxu0 0.0
        %335 = vmatpush1.msra.mxu0 %v321
        %336 = vmatprep.subr.mxu0 0.0
        %337 = vmatpush1.msra.mxu0 %v320
        %338 = vmatprep.subr.mxu0 0.0
        %339 = vmatpush1.msra.mxu0 %v319
        %340 = vmatprep.subr.mxu0 0.0
        %341 = vmatpush1.msra.mxu0 %v318
        %342 = vmatprep.subr.mxu0 0.0
        %343 = vmatpush1.msra.mxu0 %v317
        %344 = vmatprep.subr.mxu0 0.0
        %345 = vmatpush1.msra.mxu0 %v316
        %346 = vmatprep.subr.mxu0 0.0
        %347 = vmatpush1.msra.mxu0 %v315
        %348 = vmatprep.subr.mxu0 0.0
        %349 = vmatpush1.msra.mxu0 %v314
        %350 = vmatprep.subr.mxu0 0.0
        %351 = vmatpush1.msra.mxu0 %v313
        %352 = vmatprep.subr.mxu0 0.0
        %353 = vmatpush1.msra.mxu0 %v312
        %354 = vmatprep.subr.mxu0 0.0
        %355 = vmatpush1.msra.mxu0 %v311
        %356 = vmatprep.subr.mxu0 0.0
        %357 = vmatpush1.msra.mxu0 %v310
        %358 = vmatprep.subr.mxu0 0.0
        %359 = vmatpush2.msra.mxu0 0.0
        %360 = vmatprep.subr.mxu0 0.0
        %361 = vmatpush2.msra.mxu0 0.0
        %362 = vmatprep.subr.mxu0 0.0
        %363 = vmatpush2.msra.mxu0 0.0
        %364 = vmatprep.subr.mxu0 0.0
        %365 = vmatpush2.msra.mxu0 0.0
        %366 = vmatprep.subr.mxu0 0.0
        %367 = vmatpush2.msra.mxu0 0.0
        %368 = vmatprep.subr.mxu0 0.0
        %369 = vmatpush2.msra.mxu0 0.0
        %370 = vmatprep.subr.mxu0 0.0
        %371 = vmatpush2.msra.mxu0 0.0
        %372 = vmatprep.subr.mxu0 0.0
        %373 = vmatpush2.msra.mxu0 0.0
        %374 = vmatprep.subr.mxu0 0.0
        %375 = vmatpush2.msra.mxu0 0.0
        %376 = vmatprep.subr.mxu0 0.0
        %377 = vmatpush2.msra.mxu0 0.0
        %378 = vmatprep.subr.mxu0 0.0
        %379 = vmatpush2.msra.mxu0 0.0
        %380 = vmatprep.subr.mxu0 0.0
        %381 = vmatpush2.msra.mxu0 0.0
        %382 = vmatprep.subr.mxu0 0.0
        %383 = vmatpush2.msra.mxu0 0.0
        %384 = vmatprep.subr.mxu0 0.0
        %385 = vmatpush2.msra.mxu0 0.0
        %386 = vmatprep.subr.mxu0 0.0
        %387 = vmatpush2.msra.mxu0 0.0
        %388 = vmatprep.subr.mxu0 0.0
        %389 = vmatpush2.msra.mxu0 0.0
        %390 = vmatprep.mubr.f32.mxu0 0.0
        %391 = vmatmul.mubr.f32.gmra.mxu0 %v309
        %v392 = vpop.f32.mrf.mxu0
        %v393 = vadd.f32 0.0, %v392
        %v394 = vpop.f32.mrf.mxu0
        %395 = vdwg.mxu0
        %396 = vst.msk [vmem:[%s203] sm:$0xff] %vm227, %v393
        %s397 = sand.u32 %s115, 1
        %s398 = scalar_lea.sflag [#allocation3], %s397
        %s399 = sand.u32 %s115, 1
        %s400 = smul.addr %s399, 8
        %s401 = scalar_lea.vmem [#allocation2], %s400
        // Predicated region
        $region33: #{tpu_custom_call.1} parent=31 // pred_check
          %p402 = pneg %p125
        $region34: #{tpu_custom_call.1} parent=31 // pred_check_branch
          %404 = sbr.rel (%p402) target = $region36
        $region35: #{tpu_custom_call.1} parent=31 // pred_region
          %s406 = ssub.s32 128, 128
          %407 = vsyncadd %s398, %s406
          %s408 = smul.addr %s21, 128
          %s409 = scalar_lea.hbm %s3, %s408
          %s411 = sshll.u32 %s401, 4
          %s412 = int_to_ptr.vmem [resolvable:$true] %s411
          %414 = dma.vmem_to_hbm [thread:$0]  %s412, 128, %s409, %s398
        $region36: #{tpu_custom_call.1} parent=31 // pred_fallthru
          _
      $region32: #{tpu_custom_call.1} parent=5 // pred_fallthru
        _
      %p415 = scmp.le.s32.totalorder 2, %s12
      // Predicated region
      $region37: #{tpu_custom_call.1} parent=5 // pred_check
        %p416 = pneg %p415
      $region38: #{tpu_custom_call.1} parent=5 // pred_check_branch
        %418 = sbr.rel (%p416) target = $region40
      $region39: #{tpu_custom_call.1} parent=5 // pred_region
        %s419 = ssub.s32 %s12, 2
        // Predicated region
        $region41: #{tpu_custom_call.1} parent=39 // pred_check
          %p420 = pneg %p131
        $region42: #{tpu_custom_call.1} parent=39 // pred_check_branch
          %422 = sbr.rel (%p420) target = $region44
        $region43: #{tpu_custom_call.1} parent=39 // pred_region
          %s423 = sand.u32 %s116, 1
          %s424 = scalar_lea.sflag [#allocation3], %s423
          %s425 = sand.u32 %s116, 1
          %s426 = smul.addr %s425, 8
          %s427 = scalar_lea.vmem [#allocation2], %s426
          %428 = dma.done %s424, 128
        $region44: #{tpu_custom_call.1} parent=39 // pred_fallthru
          _
      $region40: #{tpu_custom_call.1} parent=5 // pred_fallthru
        _
    $region6: #{tpu_custom_call.1} parent=1 // loop_footer
      %s16 = sadd.s32 1, %s12
    $region7: #{tpu_custom_call.1} parent=1 // loop_footer_branch
      %11 = sbr.rel target = $region3
    $region8: #{tpu_custom_call.1} parent=1 // loop_exit
      _
    %429 = vsyncpa [#allocation3], 1
    %s430 = scalar_lea.sflag [#allocation3], 1
    %431 = vsyncpa %s430, 1

</llo_original>
